<compile_context>
chip_gen: v5e
topology: v5e:2x2
jax: 0.10.0
libtpu: 0.0.40
codegen_flags: <defaults>
</compile_context>

<pallas_src>
import jax
import jax.numpy as jnp
from jax.experimental import pallas as pl
from jax.experimental.pallas import tpu as pltpu


def _gemm_bias_kernel(p_ref, w_ref, b_ref, o_ref):
    # p_ref : (Kp, tile_m)  bf16 im2col patches (K in sublanes, M in lanes -> lane dense)
    # w_ref : (Cw, Kp)      bf16 weights, Cw = round_up(Cout, 16), resident
    # b_ref : (Co, 1)       f32 bias,     Co = round_up(Cout, 8)
    # o_ref : (Co, tile_m)  lane-dense output block (unmasked vst)
    acc = jnp.dot(w_ref[...], p_ref[...], preferred_element_type=jnp.float32)
    acc = acc[: o_ref.shape[0], :] + b_ref[...]      # drop padded Cout rows, add f32 bias
    o_ref[...] = acc.astype(o_ref.dtype)


def _round_up(x, m):
    return (x + m - 1) // m * m


def basic_conv(x_nchw, weight_oihw, bias, *, stride=1, padding=0, dilation=1,
               tile_m=2048, compute_dtype=jnp.bfloat16):
    """BasicConv.forward: y = Conv2d(x) + bias.  groups=1 only."""
    # TODO(synk): grouped convolution (groups > 1) not implemented.
    N, Cin, H, W = x_nchw.shape
    Cout, Cin_w, KH, KW = weight_oihw.shape
    assert Cin_w == Cin, "groups != 1 not supported"

    H_out = (H + 2 * padding - dilation * (KH - 1) - 1) // stride + 1
    W_out = (W + 2 * padding - dilation * (KW - 1) - 1) // stride + 1

    # ---------- wrapper glue (plain JAX): K-major im2col, materialized in bf16 ----------
    # Transpose only the un-expanded input (9x smaller than patches), cast to bf16
    # BEFORE the 9x expansion so the big im2col buffer is written/read as bf16.
    x_cnhw = jnp.transpose(x_nchw, (1, 0, 2, 3)).astype(compute_dtype)      # (Cin, N, H, W)
    x_pad = jnp.pad(x_cnhw, ((0, 0), (0, 0), (padding, padding), (padding, padding)))

    taps = []
    for kh in range(KH):
        for kw in range(KW):
            h0 = kh * dilation
            w0 = kw * dilation
            taps.append(x_pad[:, :, h0: h0 + (H_out - 1) * stride + 1: stride,
                                     w0: w0 + (W_out - 1) * stride + 1: stride])
    # (KH*KW, Cin, N, H_out, W_out) -> (K, M) is a pure row-major flatten (no relayout).
    # K order is (kh, kw, cin); M order is (n, h_out, w_out).
    M = N * H_out * W_out
    K = KH * KW * Cin
    p_km = jnp.stack(taps, axis=0).reshape(K, M)

    Kp = _round_up(K, 16)       # bf16 sublane packing: native (16, 128) tiles
    Cw = _round_up(Cout, 16)    # bf16 weight rows
    Co = _round_up(Cout, 8)     # f32 output rows

    # Pad M only to a 128-lane multiple; snap tile_m down so it divides Mp exactly.
    Mp = _round_up(M, 128)
    n_blocks = Mp // 128
    bpt = min(n_blocks, max(1, tile_m // 128))
    while n_blocks % bpt:
        bpt -= 1
    tile_m = bpt * 128
    grid_m = n_blocks // bpt
    # TODO(synk): on v7x (2 TensorCores) prefer an even grid_m when grid_m > 1 so
    # both cores get tiles; neutral on v5e/v6e.

    p_km = jnp.pad(p_km, ((0, Kp - K), (0, Mp - M)))

    # weights (Cw, Kp) bf16 with K order (kh, kw, cin) matching the im2col stacking
    w_ck = weight_oihw.transpose(2, 3, 1, 0).reshape(K, Cout).T              # (Cout, K)
    w_ck = jnp.pad(w_ck, ((0, Cw - Cout), (0, Kp - K))).astype(compute_dtype)
    b2d = jnp.pad(bias.reshape(Cout, 1), ((0, Co - Cout), (0, 0))).astype(jnp.float32)

    out2d = pl.pallas_call(
        _gemm_bias_kernel,
        out_shape=jax.ShapeDtypeStruct((Co, Mp), x_nchw.dtype),
        grid_spec=pltpu.PrefetchScalarGridSpec(
            num_scalar_prefetch=0,
            grid=(grid_m,),
            in_specs=[
                pl.BlockSpec((Kp, tile_m), lambda m: (0, m)),
                pl.BlockSpec((Cw, Kp), lambda m: (0, 0)),
                pl.BlockSpec((Co, 1), lambda m: (0, 0)),
            ],
            out_specs=pl.BlockSpec((Co, tile_m), lambda m: (0, m)),
        ),
        compiler_params=pltpu.CompilerParams(
            dimension_semantics=("parallel",),
            vmem_limit_bytes=64 * 1024 * 1024,
        ),
    )(p_km, w_ck, b2d)

    # (Cout, M) -> (N, Cout, H_out, W_out)
    y = out2d[:Cout, :M].reshape(Cout, N, H_out, W_out)
    return jnp.transpose(y, (1, 0, 2, 3))


if __name__ == "__main__":
    # BasicConv(in_planes=4, out_planes=8, kernel_size=3, stride=1, padding=1, bias=True)
    N, Cin, H, W = 2, 4, 16, 16
    Cout, KS = 8, 3
    stride, padding, dilation = 1, 1, 1

    key = jax.random.PRNGKey(0)
    kx, kw, kb = jax.random.split(key, 3)
    x = jax.random.normal(kx, (N, Cin, H, W), dtype=jnp.float32)
    weight = jax.random.normal(kw, (Cout, Cin, KS, KS), dtype=jnp.float32) * 0.1
    bias = jax.random.normal(kb, (Cout,), dtype=jnp.float32) * 0.1

    y = basic_conv(x, weight, bias, stride=stride, padding=padding, dilation=dilation)
    y = jax.block_until_ready(y)

    # reference with the same operand precision as the kernel (bf16 x bf16, f32 accum)
    y_ref = jax.lax.conv_general_dilated(
        x.astype(jnp.bfloat16), weight.astype(jnp.bfloat16),
        window_strides=(stride, stride),
        padding=((padding, padding), (padding, padding)),
        rhs_dilation=(dilation, dilation),
        dimension_numbers=("NCHW", "OIHW", "NCHW"),
        preferred_element_type=jnp.float32,
    ) + bias.reshape(1, Cout, 1, 1)

    assert y.shape == (N, Cout, H, W)
    assert jnp.allclose(y, y_ref, atol=1e-2, rtol=1e-2), float(jnp.max(jnp.abs(y - y_ref)))
    print("KERNEL_OK")
</pallas_src>

<mosaic_0001>
module attributes {stable_mosaic.version = 11 : i64} {
  func.func @_gemm_bias_kernel(%arg0: i32, %arg1: memref<48x512xbf16, #tpu.memory_space<vmem>>, %arg2: memref<16x48xbf16, #tpu.memory_space<vmem>>, %arg3: memref<8x1xf32, #tpu.memory_space<vmem>>, %arg4: memref<8x512xf32, #tpu.memory_space<vmem>>) attributes {dimension_semantics = [#tpu.dimension_semantics<parallel>], iteration_bounds = array<i64: 1>, scalar_prefetch = 0 : i64, scratch_operands = 0 : i64, tpu.core_type = #tpu.core_type<tc>, window_params = [{transform_indices = @transform_0, window_bounds = array<i64: 48, 512>}, {pipeline_mode = #tpu.pipeline_mode<synchronous>, transform_indices = @transform_1, window_bounds = array<i64: 16, 48>}, {pipeline_mode = #tpu.pipeline_mode<synchronous>, transform_indices = @transform_2, window_bounds = array<i64: 8, 1>}, {transform_indices = @transform_3, window_bounds = array<i64: 8, 512>}]} {
    %c0 = arith.constant 0 : index
    %c0_0 = arith.constant 0 : index
    %0 = vector.load %arg2[%c0, %c0_0] : memref<16x48xbf16, #tpu.memory_space<vmem>>, vector<16x48xbf16>
    %c0_1 = arith.constant 0 : index
    %c0_2 = arith.constant 0 : index
    %1 = vector.load %arg1[%c0_1, %c0_2] : memref<48x512xbf16, #tpu.memory_space<vmem>>, vector<48x512xbf16>
    %cst = arith.constant dense<0.000000e+00> : vector<16x512xf32>
    %2 = tpu.matmul %0, %1, %cst {dimension_numbers = #tpu.dot_dimension_numbers<[1], [0], [0], [1], [0, 0, 1, 1], [], []>} : vector<16x48xbf16>, vector<48x512xbf16>, vector<16x512xf32> -> vector<16x512xf32>
    %3 = vector.extract_strided_slice %2 {offsets = [0, 0], sizes = [8, 512], strides = [1, 1]} : vector<16x512xf32> to vector<8x512xf32>
    %c0_3 = arith.constant 0 : index
    %c0_4 = arith.constant 0 : index
    %4 = vector.load %arg3[%c0_3, %c0_4] : memref<8x1xf32, #tpu.memory_space<vmem>>, vector<8x1xf32>
    %5 = vector.broadcast %4 : vector<8x1xf32> to vector<8x512xf32>
    %6 = arith.addf %3, %5 : vector<8x512xf32>
    %c0_5 = arith.constant 0 : index
    %c0_6 = arith.constant 0 : index
    %7 = vector.load %arg4[%c0_5, %c0_6] : memref<8x512xf32, #tpu.memory_space<vmem>>, vector<8x512xf32>
    tpu.vector_store %arg4[%c0_5, %c0_6], %6 {strides = array<i32>} : memref<8x512xf32, #tpu.memory_space<vmem>>, vector<8x512xf32>,
    return
  }
  func.func @transform_0(%arg0: i32) -> (i32, i32) {
    %c0_i32 = arith.constant 0 : i32
    %c0_i32_0 = arith.constant 0 : i32
    return %c0_i32, %arg0 : i32, i32
  }
  func.func @transform_1(%arg0: i32) -> (i32, i32) {
    %c0_i32 = arith.constant 0 : i32
    %c0_i32_0 = arith.constant 0 : i32
    %c0_i32_1 = arith.constant 0 : i32
    return %c0_i32, %c0_i32_0 : i32, i32
  }
  func.func @transform_2(%arg0: i32) -> (i32, i32) {
    %c0_i32 = arith.constant 0 : i32
    %c0_i32_0 = arith.constant 0 : i32
    %c0_i32_1 = arith.constant 0 : i32
    return %c0_i32, %c0_i32_0 : i32, i32
  }
  func.func @transform_3(%arg0: i32) -> (i32, i32) {
    %c0_i32 = arith.constant 0 : i32
    %c0_i32_0 = arith.constant 0 : i32
    return %c0_i32, %arg0 : i32, i32
  }
}

</mosaic_0001>

<llo_original>
// kernel: tpu_custom_call.1
$region0: #{tpu_custom_call.1}
  #allocation0 [shape = 'u32[]', space=smem, size = 0x4, offset = 0x4, fixed_abs, tag = 'smem constant byte address 0x4 - core index']
  #allocation1 [shape = 'u32[72,128]{1,0:T(1,128)}', space=vmem, size = 0x9000, scoped, tag = 'internal scratch']
  %s0 = inlined_call_operand.hbm [shape: bf16[48,512], index: 0, kind: input, shape index: {}]
  %s1 = inlined_call_operand.vmem [shape: bf16[16,48], index: 1, kind: input, shape index: {}]
  %s2 = inlined_call_operand.vmem [shape: f32[8,1], index: 2, kind: input, shape index: {}]
  %s3 = inlined_call_operand.hbm [shape: f32[8,512], index: 3, kind: output, shape index: {}]
  %s4 = sld [smem:[#allocation0]]
  $region26: #{tpu_custom_call.1} parent=0
    _
  %s6 = ssub.s32 1, %s4
  %s7 = scalar_select 0, %s6, %s4
  $region1: #{tpu_custom_call.1} parent=0
    #allocation2 [shape = 'u8[49152]{0}', space=vmem, size = 0xc000, scoped, tag = 'input window, operand 0, single buffered']
    #allocation3 [shape = 's32[1]{0}', space=sflag, size = 0x4, scoped, tag = 'scoped memory for tpu_custom_call.1']
    #allocation4 [shape = 's32[1]{0}', space=sflag, size = 0x4, scoped, tag = 'scoped memory for tpu_custom_call.1']
    #allocation5 [shape = 'u8[16384]{0}', space=vmem, size = 0x4000, scoped, tag = 'output window, operand 0, single buffered']
    %8 = vsyncpa [#allocation3], 0
    %9 = vsyncpa [#allocation4], 0
    // Predicated region
    $region2: #{tpu_custom_call.1} parent=1 // pred_check
      _
    $region3: #{tpu_custom_call.1} parent=1 // pred_check_branch
      %11 = sbr.rel (0) target = $region5
    $region4: #{tpu_custom_call.1} parent=1 // pred_region
      %13 = vsyncadd [#allocation3], 0
      %s14 = sshll.u32 %s0, 4
      %s15 = int_to_ptr.hbm [resolvable:$true] %s14
      %s16 = sshll.u32 [#allocation2], 4
      %s17 = int_to_ptr.vmem [resolvable:$true] %s16
      %22 = dma.hbm_to_vmem [thread:$0]  %s15, 1536, %s17, [#allocation3], 256, 256, 16
    $region5: #{tpu_custom_call.1} parent=1 // pred_fallthru
      _
    // Predicated region
    $region6: #{tpu_custom_call.1} parent=1 // pred_check
      _
    $region7: #{tpu_custom_call.1} parent=1 // pred_check_branch
      %24 = sbr.rel (0) target = $region9
    $region8: #{tpu_custom_call.1} parent=1 // pred_region
      _
    $region9: #{tpu_custom_call.1} parent=1 // pred_fallthru
      _
    // Predicated region
    $region10: #{tpu_custom_call.1} parent=1 // pred_check
      _
    $region11: #{tpu_custom_call.1} parent=1 // pred_check_branch
      %26 = sbr.rel (0) target = $region13
    $region12: #{tpu_custom_call.1} parent=1 // pred_region
      _
    $region13: #{tpu_custom_call.1} parent=1 // pred_fallthru
      _
    // Predicated region
    $region14: #{tpu_custom_call.1} parent=1 // pred_check
      _
    $region15: #{tpu_custom_call.1} parent=1 // pred_check_branch
      %28 = sbr.rel (0) target = $region17
    $region16: #{tpu_custom_call.1} parent=1 // pred_region
      %30 = dma.done [#allocation3], 1536
    $region17: #{tpu_custom_call.1} parent=1 // pred_fallthru
      _
    %v32 = vld [vmem:[%s1] sm:$0xf]
    %v33 = vld [vmem:[%s1 + $0x4] sm:$0xf]
    %v34 = vld [vmem:[#allocation2] sm:$0xff]
    %v35 = vld [vmem:[#allocation2 + $0x8] sm:$0xff]
    %v36 = vld [vmem:[#allocation2 + $0x10] sm:$0xff]
    %v37 = vld [vmem:[#allocation2 + $0x18] sm:$0xff]
    %v38 = vld [vmem:[#allocation2 + $0x20] sm:$0xff]
    %v39 = vld [vmem:[#allocation2 + $0x28] sm:$0xff]
    %v40 = vld [vmem:[#allocation2 + $0x30] sm:$0xff]
    %v41 = vld [vmem:[#allocation2 + $0x38] sm:$0xff]
    %v42 = vld [vmem:[#allocation2 + $0x40] sm:$0xff]
    %v43 = vld [vmem:[#allocation2 + $0x48] sm:$0xff]
    %v44 = vld [vmem:[#allocation2 + $0x50] sm:$0xff]
    %v45 = vld [vmem:[#allocation2 + $0x58] sm:$0xff]
    %v48 = vunpack.c.l.b16 %v32
    %v49 = vunpack.c.l.b16 %v33
    %v50 = vpack.c.b16 %v49, %v48
    %v63 = vunpack.c.l.b16 %v34
    %v64 = vunpack.c.h.b16 %v34
    %v65 = vunpack.c.l.b16 %v35
    %v66 = vunpack.c.h.b16 %v35
    %v67 = vunpack.c.l.b16 %v36
    %v68 = vunpack.c.h.b16 %v36
    %v69 = vunpack.c.l.b16 %v37
    %v70 = vunpack.c.h.b16 %v37
    %v71 = vunpack.c.l.b16 %v38
    %v72 = vunpack.c.h.b16 %v38
    %v73 = vunpack.c.l.b16 %v39
    %v74 = vunpack.c.h.b16 %v39
    %v75 = vunpack.c.l.b16 %v40
    %v76 = vunpack.c.h.b16 %v40
    %v77 = vunpack.c.l.b16 %v41
    %v78 = vunpack.c.h.b16 %v41
    %v79 = vunpack.c.l.b16 %v42
    %v80 = vunpack.c.h.b16 %v42
    %v81 = vunpack.c.l.b16 %v43
    %v82 = vunpack.c.h.b16 %v43
    %v83 = vunpack.c.l.b16 %v44
    %v84 = vunpack.c.h.b16 %v44
    %v85 = vunpack.c.l.b16 %v45
    %v86 = vunpack.c.h.b16 %v45
    %v87 = vpack.c.b16 %v67, %v63
    %v88 = vpack.c.b16 %v68, %v64
    %v89 = vpack.c.b16 %v69, %v65
    %v90 = vpack.c.b16 %v70, %v66
    %v91 = vpack.c.b16 %v75, %v71
    %v92 = vpack.c.b16 %v76, %v72
    %v93 = vpack.c.b16 %v77, %v73
    %v94 = vpack.c.b16 %v78, %v74
    %v95 = vpack.c.b16 %v83, %v79
    %v96 = vpack.c.b16 %v84, %v80
    %v97 = vpack.c.b16 %v85, %v81
    %v98 = vpack.c.b16 %v86, %v82
    %vm111 = vcmask 392192
    %v113 = vsel %vm111, %v50, 0
    %115 = vmatpush.bf16.msra.mxu0 0
    %116 = vmatpush.bf16.msra.mxu0 0
    %117 = vmatpush.bf16.msra.mxu0 0
    %118 = vmatpush.bf16.msra.mxu0 0
    %119 = vmatpush.bf16.msra.mxu0 0
    %120 = vmatpush.bf16.msra.mxu0 %v95
    %121 = vmatpush.bf16.msra.mxu0 %v91
    %122 = vmatpush.bf16.msra.mxu0 %v87
    %123 = vmatmul.bf16.gmra.mxu0 %v113
    %v124 = vpop.f32.mrf.mxu0
    %v125 = vadd.f32 0.0, %v124
    %v126 = vpop.f32.mrf.mxu0
    %127 = vdwg.mxu0
    %128 = vmatpush.bf16.msra.mxu0 0
    %129 = vmatpush.bf16.msra.mxu0 0
    %130 = vmatpush.bf16.msra.mxu0 0
    %131 = vmatpush.bf16.msra.mxu0 0
    %132 = vmatpush.bf16.msra.mxu0 0
    %133 = vmatpush.bf16.msra.mxu0 %v96
    %134 = vmatpush.bf16.msra.mxu0 %v92
    %135 = vmatpush.bf16.msra.mxu0 %v88
    %136 = vmatmul.bf16.gmra.mxu0 %v113
    %v137 = vpop.f32.mrf.mxu0
    %v138 = vadd.f32 0.0, %v137
    %v139 = vpop.f32.mrf.mxu0
    %140 = vdwg.mxu0
    %141 = vmatpush.bf16.msra.mxu0 0
    %142 = vmatpush.bf16.msra.mxu0 0
    %143 = vmatpush.bf16.msra.mxu0 0
    %144 = vmatpush.bf16.msra.mxu0 0
    %145 = vmatpush.bf16.msra.mxu0 0
    %146 = vmatpush.bf16.msra.mxu0 %v97
    %147 = vmatpush.bf16.msra.mxu0 %v93
    %148 = vmatpush.bf16.msra.mxu0 %v89
    %149 = vmatmul.bf16.gmra.mxu0 %v113
    %v150 = vpop.f32.mrf.mxu0
    %v151 = vadd.f32 0.0, %v150
    %v152 = vpop.f32.mrf.mxu0
    %153 = vdwg.mxu0
    %154 = vmatpush.bf16.msra.mxu0 0
    %155 = vmatpush.bf16.msra.mxu0 0
    %156 = vmatpush.bf16.msra.mxu0 0
    %157 = vmatpush.bf16.msra.mxu0 0
    %158 = vmatpush.bf16.msra.mxu0 0
    %159 = vmatpush.bf16.msra.mxu0 %v98
    %160 = vmatpush.bf16.msra.mxu0 %v94
    %161 = vmatpush.bf16.msra.mxu0 %v90
    %162 = vmatmul.bf16.gmra.mxu0 %v113
    %v163 = vpop.f32.mrf.mxu0
    %v164 = vadd.f32 0.0, %v163
    %v165 = vpop.f32.mrf.mxu0
    %166 = vdwg.mxu0
    %v167 = vld [vmem:[%s2] sm:$0xff]
    %169 = vset.pattern.permute.xlu0 0
    %170 = vperm.xlu0 %169, %v167
    %v171 = vpop.permute.xlu0 %170
    %v173 = vadd.f32 %v125, %v171
    %v174 = vadd.f32 %v138, %v171
    %v175 = vadd.f32 %v151, %v171
    %v176 = vadd.f32 %v164, %v171
    %177 = vst [vmem:[#allocation5] sm:$0xff] %v173
    %178 = vst [vmem:[#allocation5 + $0x8] sm:$0xff] %v174
    %179 = vst [vmem:[#allocation5 + $0x10] sm:$0xff] %v175
    %180 = vst [vmem:[#allocation5 + $0x18] sm:$0xff] %v176
    // Predicated region
    $region18: #{tpu_custom_call.1} parent=1 // pred_check
      _
    $region19: #{tpu_custom_call.1} parent=1 // pred_check_branch
      %182 = sbr.rel (0) target = $region21
    $region20: #{tpu_custom_call.1} parent=1 // pred_region
      %184 = vsyncadd [#allocation4], 0
      %s186 = sshll.u32 [#allocation5], 4
      %s187 = int_to_ptr.vmem [resolvable:$true] %s186
      %s188 = sshll.u32 %s3, 4
      %s189 = int_to_ptr.hbm [resolvable:$true] %s188
      %191 = dma.vmem_to_hbm [thread:$0]  %s187, 512, %s189, [#allocation4]
    $region21: #{tpu_custom_call.1} parent=1 // pred_fallthru
      _
    // Predicated region
    $region22: #{tpu_custom_call.1} parent=1 // pred_check
      _
    $region23: #{tpu_custom_call.1} parent=1 // pred_check_branch
      %193 = sbr.rel (0) target = $region25
    $region24: #{tpu_custom_call.1} parent=1 // pred_region
      %195 = dma.done [#allocation4], 512
    $region25: #{tpu_custom_call.1} parent=1 // pred_fallthru
      _
    %196 = vsyncpa [#allocation3], 1
    %197 = vsyncpa [#allocation4], 1

</llo_original>
